<compile_context>
chip_gen: v7x
topology: tpu7x:2x2x1
jax: 0.10.0
libtpu: 0.0.40
codegen_flags: <defaults>
</compile_context>

<pallas_src>
import functools

import jax
import jax.numpy as jnp
from jax.experimental import pallas as pl
from jax.experimental.pallas import tpu as pltpu


def _round_up(x, m):
    return ((x + m - 1) // m) * m


def _ceil_div(a, b):
    return -(-a // b)


def _pair(v):
    return (v, v) if isinstance(v, int) else tuple(v)


# --------------------------------------------------------------------------------------
# Pallas kernel: in-VMEM tap extraction into a patch scratch + one MXU matmul
#                + BN shift + ReLU, bf16 store.
# --------------------------------------------------------------------------------------
def _conv_bn_relu_kernel(x_ref, w_ref, shift_ref, o_ref, patch_ref, *,
                         kh, kw, w_pad, c_in_pad, m_tile):
    # x_ref    : (1, 1, C_in_pad, w_win)      bf16  windowed, spatially padded input slab
    # w_ref    : (C_out_pad, KH*KW*C_in_pad)  bf16  BN scale folded in, tap-major K layout
    # shift_ref: (C_out_pad, 1)               f32   per-channel BN shift
    # o_ref    : (1, C_out_pad, m_tile)       bf16  channels-major dense conv output tile
    # patch_ref: (KH*KW*C_in_pad, m_tile)     bf16  VMEM scratch of tap-shifted activations
    for t in range(kh * kw):
        dh, dw = divmod(t, kw)
        off = dh * w_pad + dw                          # static lane offset of this tap
        patch_ref[t * c_in_pad:(t + 1) * c_in_pad, :] = x_ref[0, 0, :, off:off + m_tile]
    # Single merged-K matmul (f32 accumulation inside the MXU result path).
    acc = jnp.dot(w_ref[...], patch_ref[...], preferred_element_type=jnp.float32)
    y = jnp.maximum(acc + shift_ref[...], 0.0)         # f32 epilogue: BN shift + ReLU
    o_ref[0] = y.astype(o_ref.dtype)


# --------------------------------------------------------------------------------------
# Wrapper: parameter folding + layout prep + pallas_call
# --------------------------------------------------------------------------------------
def drop_conv_block_forward(x_nchw, params, *, stride, padding):
    """Forward pass of DropConvBlock (eval mode). x_nchw: (N, C_in, H, W) float32."""
    w = params["conv_weight"]              # (C_out, C_in, KH, KW) - PyTorch layout
    gamma = params["bn_gamma"]
    beta = params["bn_beta"]
    mean = params["bn_running_mean"]
    var = params["bn_running_var"]
    eps = params["bn_eps"]
    bias = params.get("conv_bias", None)   # module default: bias=False

    C_out, C_in, KH, KW = w.shape
    N, _, H, W = x_nchw.shape
    sh, sw = _pair(stride)
    ph, pw = _pair(padding)

    # ---- fold BatchNorm into the conv weight (scale) and a per-channel shift ----------
    scale = gamma / jnp.sqrt(var + eps)                        # (C_out,)
    shift = beta - mean * scale                                # (C_out,)
    if bias is not None:
        shift = shift + scale * bias
    w_folded = w * scale[:, None, None, None]                  # (C_out, C_in, KH, KW)

    # ---- channel padding: only what layout needs (16 = bf16 sublane packing) ----------
    C_out_pad = _round_up(C_out, 16)       # sublane (M) dim of the channels-major output
    C_in_pad = _round_up(C_in, 16)         # sublane-aligned rows of the bf16 patch scratch
    KD = KH * KW * C_in_pad                # merged contraction depth

    # Merged weight matrix (C_out_pad, KH*KW*C_in_pad), tap-major K, bf16 for the MXU.
    w_k = jnp.transpose(w_folded, (0, 2, 3, 1))                # (C_out, KH, KW, C_in)
    w_k = jnp.pad(w_k, ((0, C_out_pad - C_out), (0, 0), (0, 0), (0, C_in_pad - C_in)))
    w_mat = w_k.reshape(C_out_pad, KD).astype(jnp.bfloat16)

    shift_col = jnp.pad(shift, (0, C_out_pad - C_out)).reshape(C_out_pad, 1)
    shift_col = shift_col.astype(jnp.float32)

    # ---- spatial geometry (dense stride-1 grid over the padded image rows) ------------
    H_padded, W_padded = H + 2 * ph, W + 2 * pw
    H_dense = H_padded - KH + 1
    H_out = (H + 2 * ph - KH) // sh + 1
    W_out = (W + 2 * pw - KW) // sw + 1
    M_rows = H_dense * W_padded            # dense output lanes per sample

    # ---- lane (spatial) tiling: balanced ~512-lane tiles, multiple of 128 -------------
    target_m = 512
    n_m = max(1, _ceil_div(M_rows, target_m))
    m_tile = _round_up(_ceil_div(M_rows, n_m), 128)
    n_m = _ceil_div(M_rows, m_tile)
    M_padded = n_m * m_tile

    halo = (KH - 1) * W_padded + (KW - 1)  # extra trailing lanes each tile's taps read
    w_win = m_tile + halo                  # per-tile input window width
    R = M_padded + halo                    # total flattened (zero-padded) input lanes

    # ---- input prep: NCHW kept (no transpose), pad, cast bf16, flatten, window --------
    # TODO(synk): fuse this pad + bf16 cast + windowing into the kernel (in-VMEM halo
    # zero-fill) to remove the extra XLA pass over the activation.
    xp = jnp.pad(x_nchw.astype(jnp.bfloat16),
                 ((0, 0), (0, C_in_pad - C_in), (ph, ph), (pw, pw)))
    x_flat = xp.reshape(N, C_in_pad, H_padded * W_padded)
    x_flat = jnp.pad(x_flat, ((0, 0), (0, 0), (0, R - H_padded * W_padded)))
    # Replicate the per-tile halo so every kernel slice is a static, in-bounds lane slice.
    x_win = jnp.stack(
        [x_flat[:, :, i * m_tile:i * m_tile + w_win] for i in range(n_m)], axis=1)
    # x_win: (N, n_m, C_in_pad, w_win)

    kernel = functools.partial(_conv_bn_relu_kernel, kh=KH, kw=KW, w_pad=W_padded,
                               c_in_pad=C_in_pad, m_tile=m_tile)

    # Per-step VMEM budget (double-buffered blocks + weights + scratch) -> explicit limit.
    est = (2 * (C_in_pad * w_win * 2 + C_out_pad * m_tile * 2
                + C_out_pad * KD * 2 + C_out_pad * 4)
           + KD * m_tile * 2)
    vmem_limit = int(min(max(4 * est, 16 * 2 ** 20), 64 * 2 ** 20))

    dense = pl.pallas_call(
        kernel,
        out_shape=jax.ShapeDtypeStruct((N, C_out_pad, M_padded), jnp.bfloat16),
        grid_spec=pltpu.PrefetchScalarGridSpec(
            num_scalar_prefetch=0,
            grid=(N, n_m),
            in_specs=[
                pl.BlockSpec((1, 1, C_in_pad, w_win), lambda n, m: (n, m, 0, 0)),
                pl.BlockSpec((C_out_pad, KD), lambda n, m: (0, 0)),
                pl.BlockSpec((C_out_pad, 1), lambda n, m: (0, 0)),
            ],
            out_specs=pl.BlockSpec((1, C_out_pad, m_tile), lambda n, m: (n, 0, m)),
            scratch_shapes=[pltpu.VMEM((KD, m_tile), jnp.bfloat16)],
        ),
        compiler_params=pltpu.CompilerParams(
            dimension_semantics=("parallel", "parallel"),
            vmem_limit_bytes=vmem_limit),
    )(x_win, w_mat, shift_col)

    # Channels-major result -> NCHW with a free reshape + small slices (no transpose).
    # TODO(synk): for stride > 1, subsample rows inside the kernel instead of post-slicing.
    dense = dense[:, :C_out, :M_rows].reshape(N, C_out, H_dense, W_padded)
    out = dense[:, :, :sh * (H_out - 1) + 1:sh, :sw * (W_out - 1) + 1:sw]
    # TODO(synk): training-mode Dropout2d (per-channel mask + 1/(1-p) scaling) and BN batch
    # statistics not implemented; in eval mode both reduce to the computation above.
    return out.astype(x_nchw.dtype)


# --------------------------------------------------------------------------------------
# Deterministic parameter construction (matches nn.Conv2d / nn.BatchNorm2d shapes)
# --------------------------------------------------------------------------------------
def make_params(key, in_channels, out_channels, kernel_size):
    k_w, k_m, k_v = jax.random.split(key, 3)
    kh, kw = kernel_size
    conv_weight = jax.random.normal(k_w, (out_channels, in_channels, kh, kw),
                                    dtype=jnp.float32) * 0.1
    return {
        "conv_weight": conv_weight,                                   # bias=False
        "bn_gamma": jnp.ones((out_channels,), jnp.float32),
        "bn_beta": jnp.zeros((out_channels,), jnp.float32),
        "bn_running_mean": jax.random.normal(k_m, (out_channels,), jnp.float32) * 0.05,
        "bn_running_var": jnp.abs(jax.random.normal(k_v, (out_channels,), jnp.float32)) * 0.5 + 0.5,
        "bn_eps": jnp.float32(1e-5),
    }


if __name__ == "__main__":
    key = jax.random.PRNGKey(0)
    k_x, k_p = jax.random.split(key)

    N, C_in, H, W = 2, 4, 16, 16
    C_out = 8
    kernel_size = (3, 3)
    stride = (1, 1)
    padding = (1, 1)

    x = jax.random.normal(k_x, (N, C_in, H, W), dtype=jnp.float32)
    params = make_params(k_p, C_in, C_out, kernel_size)

    fwd = jax.jit(functools.partial(drop_conv_block_forward,
                                    stride=stride, padding=padding))
    out = jax.block_until_ready(fwd(x, params))

    assert out.shape == (N, C_out, H, W), out.shape
    assert bool(jnp.all(out >= 0.0))  # ReLU sanity

    # Cross-check against a plain-JAX reference of the module (eval mode).
    # bf16 MXU inputs / bf16 output give ~1e-2-level differences at these magnitudes.
    conv_ref = jax.lax.conv_general_dilated(
        x, params["conv_weight"], window_strides=stride,
        padding=[(padding[0], padding[0]), (padding[1], padding[1])],
        dimension_numbers=("NCHW", "OIHW", "NCHW"))
    scale_ref = params["bn_gamma"] / jnp.sqrt(params["bn_running_var"] + params["bn_eps"])
    shift_ref = params["bn_beta"] - params["bn_running_mean"] * scale_ref
    ref = jnp.maximum(conv_ref * scale_ref[None, :, None, None]
                      + shift_ref[None, :, None, None], 0.0)
    max_err = float(jnp.max(jnp.abs(out - ref)))
    assert max_err < 0.1, max_err

    print("KERNEL_OK")
</pallas_src>

<mosaic_0001>
module attributes {stable_mosaic.version = 11 : i64} {
  func.func @_conv_bn_relu_kernel(%arg0: i32, %arg1: i32, %arg2: memref<1x1x16x422xbf16, #tpu.memory_space<vmem>>, %arg3: memref<16x144xbf16, #tpu.memory_space<vmem>>, %arg4: memref<16x1xf32, #tpu.memory_space<vmem>>, %arg5: memref<1x16x384xbf16, #tpu.memory_space<vmem>>, %arg6: memref<144x384xbf16, #tpu.memory_space<vmem>>) attributes {dimension_semantics = [#tpu.dimension_semantics<parallel>, #tpu.dimension_semantics<parallel>], iteration_bounds = array<i64: 2, 1>, scalar_prefetch = 0 : i64, scratch_operands = 1 : i64, tpu.core_type = #tpu.core_type<tc>, window_params = [{transform_indices = @transform_0, window_bounds = array<i64: 1, 1, 16, 422>}, {pipeline_mode = #tpu.pipeline_mode<synchronous>, transform_indices = @transform_1, window_bounds = array<i64: 16, 144>}, {pipeline_mode = #tpu.pipeline_mode<synchronous>, transform_indices = @transform_2, window_bounds = array<i64: 16, 1>}, {transform_indices = @transform_3, window_bounds = array<i64: 1, 16, 384>}]} {
    %c0 = arith.constant 0 : index
    %c0_0 = arith.constant 0 : index
    %c0_1 = arith.constant 0 : index
    %c0_2 = arith.constant 0 : index
    %0 = vector.load %arg2[%c0, %c0_0, %c0_1, %c0_2] : memref<1x1x16x422xbf16, #tpu.memory_space<vmem>>, vector<1x1x16x384xbf16>
    %1 = vector.shape_cast %0 : vector<1x1x16x384xbf16> to vector<16x384xbf16>
    %c0_3 = arith.constant 0 : index
    %c0_4 = arith.constant 0 : index
    %2 = vector.load %arg6[%c0_3, %c0_4] : memref<144x384xbf16, #tpu.memory_space<vmem>>, vector<16x384xbf16>
    tpu.vector_store %arg6[%c0_3, %c0_4], %1 {strides = array<i32>} : memref<144x384xbf16, #tpu.memory_space<vmem>>, vector<16x384xbf16>,
    %c0_5 = arith.constant 0 : index
    %c0_6 = arith.constant 0 : index
    %c0_7 = arith.constant 0 : index
    %c1 = arith.constant 1 : index
    %3 = vector.load %arg2[%c0_5, %c0_6, %c0_7, %c1] : memref<1x1x16x422xbf16, #tpu.memory_space<vmem>>, vector<1x1x16x384xbf16>
    %4 = vector.shape_cast %3 : vector<1x1x16x384xbf16> to vector<16x384xbf16>
    %c16 = arith.constant 16 : index
    %c0_8 = arith.constant 0 : index
    %5 = vector.load %arg6[%c16, %c0_8] : memref<144x384xbf16, #tpu.memory_space<vmem>>, vector<16x384xbf16>
    tpu.vector_store %arg6[%c16, %c0_8], %4 {strides = array<i32>} : memref<144x384xbf16, #tpu.memory_space<vmem>>, vector<16x384xbf16>,
    %c0_9 = arith.constant 0 : index
    %c0_10 = arith.constant 0 : index
    %c0_11 = arith.constant 0 : index
    %c2 = arith.constant 2 : index
    %6 = vector.load %arg2[%c0_9, %c0_10, %c0_11, %c2] : memref<1x1x16x422xbf16, #tpu.memory_space<vmem>>, vector<1x1x16x384xbf16>
    %7 = vector.shape_cast %6 : vector<1x1x16x384xbf16> to vector<16x384xbf16>
    %c32 = arith.constant 32 : index
    %c0_12 = arith.constant 0 : index
    %8 = vector.load %arg6[%c32, %c0_12] : memref<144x384xbf16, #tpu.memory_space<vmem>>, vector<16x384xbf16>
    tpu.vector_store %arg6[%c32, %c0_12], %7 {strides = array<i32>} : memref<144x384xbf16, #tpu.memory_space<vmem>>, vector<16x384xbf16>,
    %c0_13 = arith.constant 0 : index
    %c0_14 = arith.constant 0 : index
    %c0_15 = arith.constant 0 : index
    %c18 = arith.constant 18 : index
    %9 = vector.load %arg2[%c0_13, %c0_14, %c0_15, %c18] : memref<1x1x16x422xbf16, #tpu.memory_space<vmem>>, vector<1x1x16x384xbf16>
    %10 = vector.shape_cast %9 : vector<1x1x16x384xbf16> to vector<16x384xbf16>
    %c48 = arith.constant 48 : index
    %c0_16 = arith.constant 0 : index
    %11 = vector.load %arg6[%c48, %c0_16] : memref<144x384xbf16, #tpu.memory_space<vmem>>, vector<16x384xbf16>
    tpu.vector_store %arg6[%c48, %c0_16], %10 {strides = array<i32>} : memref<144x384xbf16, #tpu.memory_space<vmem>>, vector<16x384xbf16>,
    %c0_17 = arith.constant 0 : index
    %c0_18 = arith.constant 0 : index
    %c0_19 = arith.constant 0 : index
    %c19 = arith.constant 19 : index
    %12 = vector.load %arg2[%c0_17, %c0_18, %c0_19, %c19] : memref<1x1x16x422xbf16, #tpu.memory_space<vmem>>, vector<1x1x16x384xbf16>
    %13 = vector.shape_cast %12 : vector<1x1x16x384xbf16> to vector<16x384xbf16>
    %c64 = arith.constant 64 : index
    %c0_20 = arith.constant 0 : index
    %14 = vector.load %arg6[%c64, %c0_20] : memref<144x384xbf16, #tpu.memory_space<vmem>>, vector<16x384xbf16>
    tpu.vector_store %arg6[%c64, %c0_20], %13 {strides = array<i32>} : memref<144x384xbf16, #tpu.memory_space<vmem>>, vector<16x384xbf16>,
    %c0_21 = arith.constant 0 : index
    %c0_22 = arith.constant 0 : index
    %c0_23 = arith.constant 0 : index
    %c20 = arith.constant 20 : index
    %15 = vector.load %arg2[%c0_21, %c0_22, %c0_23, %c20] : memref<1x1x16x422xbf16, #tpu.memory_space<vmem>>, vector<1x1x16x384xbf16>
    %16 = vector.shape_cast %15 : vector<1x1x16x384xbf16> to vector<16x384xbf16>
    %c80 = arith.constant 80 : index
    %c0_24 = arith.constant 0 : index
    %17 = vector.load %arg6[%c80, %c0_24] : memref<144x384xbf16, #tpu.memory_space<vmem>>, vector<16x384xbf16>
    tpu.vector_store %arg6[%c80, %c0_24], %16 {strides = array<i32>} : memref<144x384xbf16, #tpu.memory_space<vmem>>, vector<16x384xbf16>,
    %c0_25 = arith.constant 0 : index
    %c0_26 = arith.constant 0 : index
    %c0_27 = arith.constant 0 : index
    %c36 = arith.constant 36 : index
    %18 = vector.load %arg2[%c0_25, %c0_26, %c0_27, %c36] : memref<1x1x16x422xbf16, #tpu.memory_space<vmem>>, vector<1x1x16x384xbf16>
    %19 = vector.shape_cast %18 : vector<1x1x16x384xbf16> to vector<16x384xbf16>
    %c96 = arith.constant 96 : index
    %c0_28 = arith.constant 0 : index
    %20 = vector.load %arg6[%c96, %c0_28] : memref<144x384xbf16, #tpu.memory_space<vmem>>, vector<16x384xbf16>
    tpu.vector_store %arg6[%c96, %c0_28], %19 {strides = array<i32>} : memref<144x384xbf16, #tpu.memory_space<vmem>>, vector<16x384xbf16>,
    %c0_29 = arith.constant 0 : index
    %c0_30 = arith.constant 0 : index
    %c0_31 = arith.constant 0 : index
    %c37 = arith.constant 37 : index
    %21 = vector.load %arg2[%c0_29, %c0_30, %c0_31, %c37] : memref<1x1x16x422xbf16, #tpu.memory_space<vmem>>, vector<1x1x16x384xbf16>
    %22 = vector.shape_cast %21 : vector<1x1x16x384xbf16> to vector<16x384xbf16>
    %c112 = arith.constant 112 : index
    %c0_32 = arith.constant 0 : index
    %23 = vector.load %arg6[%c112, %c0_32] : memref<144x384xbf16, #tpu.memory_space<vmem>>, vector<16x384xbf16>
    tpu.vector_store %arg6[%c112, %c0_32], %22 {strides = array<i32>} : memref<144x384xbf16, #tpu.memory_space<vmem>>, vector<16x384xbf16>,
    %c0_33 = arith.constant 0 : index
    %c0_34 = arith.constant 0 : index
    %c0_35 = arith.constant 0 : index
    %c38 = arith.constant 38 : index
    %24 = vector.load %arg2[%c0_33, %c0_34, %c0_35, %c38] : memref<1x1x16x422xbf16, #tpu.memory_space<vmem>>, vector<1x1x16x384xbf16>
    %25 = vector.shape_cast %24 : vector<1x1x16x384xbf16> to vector<16x384xbf16>
    %c128 = arith.constant 128 : index
    %c0_36 = arith.constant 0 : index
    %26 = vector.load %arg6[%c128, %c0_36] : memref<144x384xbf16, #tpu.memory_space<vmem>>, vector<16x384xbf16>
    tpu.vector_store %arg6[%c128, %c0_36], %25 {strides = array<i32>} : memref<144x384xbf16, #tpu.memory_space<vmem>>, vector<16x384xbf16>,
    %c0_37 = arith.constant 0 : index
    %c0_38 = arith.constant 0 : index
    %27 = vector.load %arg3[%c0_37, %c0_38] : memref<16x144xbf16, #tpu.memory_space<vmem>>, vector<16x144xbf16>
    %c0_39 = arith.constant 0 : index
    %c0_40 = arith.constant 0 : index
    %28 = vector.load %arg6[%c0_39, %c0_40] : memref<144x384xbf16, #tpu.memory_space<vmem>>, vector<144x384xbf16>
    %cst = arith.constant dense<0.000000e+00> : vector<16x384xf32>
    %29 = tpu.matmul %27, %28, %cst {dimension_numbers = #tpu.dot_dimension_numbers<[1], [0], [0], [1], [0, 0, 1, 1], [], []>} : vector<16x144xbf16>, vector<144x384xbf16>, vector<16x384xf32> -> vector<16x384xf32>
    %c0_41 = arith.constant 0 : index
    %c0_42 = arith.constant 0 : index
    %30 = vector.load %arg4[%c0_41, %c0_42] : memref<16x1xf32, #tpu.memory_space<vmem>>, vector<16x1xf32>
    %31 = vector.broadcast %30 : vector<16x1xf32> to vector<16x384xf32>
    %32 = arith.addf %29, %31 : vector<16x384xf32>
    %cst_43 = arith.constant 0.000000e+00 : f32
    %33 = vector.broadcast %cst_43 : f32 to vector<16x384xf32>
    %34 = arith.maximumf %32, %33 : vector<16x384xf32>
    %35 = arith.truncf %34 : vector<16x384xf32> to vector<16x384xbf16>
    %c0_44 = arith.constant 0 : index
    %c0_45 = arith.constant 0 : index
    %c0_46 = arith.constant 0 : index
    %36 = vector.load %arg5[%c0_44, %c0_45, %c0_46] : memref<1x16x384xbf16, #tpu.memory_space<vmem>>, vector<1x16x384xbf16>
    %37 = vector.shape_cast %36 : vector<1x16x384xbf16> to vector<16x384xbf16>
    %38 = vector.shape_cast %35 : vector<16x384xbf16> to vector<1x16x384xbf16>
    tpu.vector_store %arg5[%c0_44, %c0_45, %c0_46], %38 {strides = array<i32>} : memref<1x16x384xbf16, #tpu.memory_space<vmem>>, vector<1x16x384xbf16>,
    return
  }
  func.func @transform_0(%arg0: i32, %arg1: i32) -> (i32, i32, i32, i32) {
    %c0_i32 = arith.constant 0 : i32
    %c0_i32_0 = arith.constant 0 : i32
    %c0_i32_1 = arith.constant 0 : i32
    return %arg0, %arg1, %c0_i32, %c0_i32_0 : i32, i32, i32, i32
  }
  func.func @transform_1(%arg0: i32, %arg1: i32) -> (i32, i32) {
    %c0_i32 = arith.constant 0 : i32
    %c0_i32_0 = arith.constant 0 : i32
    %c0_i32_1 = arith.constant 0 : i32
    return %c0_i32, %c0_i32_0 : i32, i32
  }
  func.func @transform_2(%arg0: i32, %arg1: i32) -> (i32, i32) {
    %c0_i32 = arith.constant 0 : i32
    %c0_i32_0 = arith.constant 0 : i32
    %c0_i32_1 = arith.constant 0 : i32
    return %c0_i32, %c0_i32_0 : i32, i32
  }
  func.func @transform_3(%arg0: i32, %arg1: i32) -> (i32, i32, i32) {
    %c0_i32 = arith.constant 0 : i32
    %c0_i32_0 = arith.constant 0 : i32
    return %arg0, %c0_i32, %arg1 : i32, i32, i32
  }
}

</mosaic_0001>

<llo_original>
// kernel: drop_conv_block_forward.1
$region0: #{drop_conv_block_forward.1}
  #allocation0 [shape = 'u32[]', space=smem, size = 0x4, offset = 0x4, fixed_abs, tag = 'smem constant byte address 0x4 - core index']
  #allocation1 [shape = 'u32[144,128]{1,0:T(1,128)}', space=vmem, size = 0x12000, scoped, tag = 'internal scratch']
  #allocation2 [shape = 'bf16[144,384]{1,0:T(16,128)(2,1)}', space=vmem, size = 0x1b000, scoped, tag = 'scratch operand']
  %s0 = inlined_call_operand.vmem [shape: bf16[2,1,16,422], index: 0, kind: input, shape index: {}]
  %s1 = inlined_call_operand.vmem [shape: bf16[16,144], index: 1, kind: input, shape index: {}]
  %s2 = inlined_call_operand.vmem [shape: f32[16,1], index: 2, kind: input, shape index: {}]
  %s3 = inlined_call_operand.vmem [shape: bf16[2,16,384], index: 3, kind: output, shape index: {}]
  %s4 = sld [smem:[#allocation0]]
  $region45: #{drop_conv_block_forward.1} parent=0
    _
  %s6 = ssub.s32 1, %s4
  %s7 = scalar_select 0, %s6, %s4
  loop: start=0, step=1, limit=4
  $region2: #{drop_conv_block_forward.1} parent=0 // loop_pre_header
    _
  $region3: #{drop_conv_block_forward.1} parent=0 // loop_header
    %s9 = sphi 0, %s13
    %p10 = scmp.ge.s32.totalorder %s9, 4
    %s16 = sphi 0, %s28
    %s17 = sphi 0, %s24
    %s18 = sphi 0, %s16
    %s19 = sphi 0, %s17
    %s20 = sphi 0, %s18
    %s21 = sphi 0, %s19
    %s33 = sphi 0, %s35
    %s36 = sphi 0, %s33
    %s37 = sphi 0, %s36
    %s53 = sphi 0, %s37
    %s57 = sphi 0, %s57
    %s59 = sphi 0, %s57
    %s60 = sphi 0, %s59
    %s74 = sphi 0, %s60
    %s78 = sphi 0, %s78
    %s80 = sphi 0, %s78
    %s81 = sphi 0, %s80
    %s95 = sphi 0, %s81
    %s103 = sphi 0, %s105
    %s106 = sphi 0, %s103
    %s107 = sphi 0, %s106
    %s123 = sphi 0, %s107
  $region4: #{drop_conv_block_forward.1} parent=0 // loop_header_branch
    %12 = sbr.rel (%p10) target = $region8
  $region5: #{drop_conv_block_forward.1} parent=0 // loop_body
    %s14 = ssub.s32 %s9, 1
    %s15 = ssub.s32 %s9, 2
    %s22 = sadd.s32 1, %s17
    %p23 = scmp.ge.s32.totalorder %s22, 1
    %s24 = scalar_select %p23, 0, %s22
    %s25 = sadd.s32 1, %s16
    %s26 = scalar_select %p23, %s25, %s16
    %p27 = scmp.ge.s32.totalorder %s26, 2
    %s28 = scalar_select %p27, 0, %s26
    %s29 = ssub.s32 %s16, %s28
    %s30 = ssub.s32 %s17, %s24
    %s31 = sor.u32 %s29, %s30
    %p32 = scmp.eq.s32.totalorder %s31, 0
    %s34 = sadd.s32 %s33, 1
    %s35 = scalar_select %p32, %s33, %s34
    %p38 = pneg %p32
    %p39 = scmp.eq.s32.totalorder %s9, 1
    %p40 = por %p38, %p39
    %p41 = scmp.ne.s32.totalorder %s33, %s36
    %p42 = scmp.eq.s32.totalorder %s9, 0
    %p43 = por %p41, %p42
    %p44 = scmp.ne.s32.totalorder %s33, %s36
    %p45 = scmp.eq.s32.totalorder %s14, 1
    %p46 = por %p44, %p45
    %p47 = scmp.ne.s32.totalorder %s36, %s37
    %p48 = scmp.eq.s32.totalorder %s14, 0
    %p49 = por %p47, %p48
    %p50 = scmp.ne.s32.totalorder %s36, %s37
    %p51 = scmp.eq.s32.totalorder %s15, 1
    %p52 = por %p50, %p51
    %p54 = scmp.ne.s32.totalorder %s37, %s53
    %p55 = scmp.eq.s32.totalorder %s15, 0
    %p56 = por %p54, %p55
    %s58 = sadd.s32 %s57, 1
    %p61 = scmp.eq.s32.totalorder %s9, 1
    %p62 = scmp.ne.s32.totalorder %s57, %s59
    %p63 = scmp.eq.s32.totalorder %s9, 0
    %p64 = por %p62, %p63
    %p65 = scmp.ne.s32.totalorder %s57, %s59
    %p66 = scmp.eq.s32.totalorder %s14, 1
    %p67 = por %p65, %p66
    %p68 = scmp.ne.s32.totalorder %s59, %s60
    %p69 = scmp.eq.s32.totalorder %s14, 0
    %p70 = por %p68, %p69
    %p71 = scmp.ne.s32.totalorder %s59, %s60
    %p72 = scmp.eq.s32.totalorder %s15, 1
    %p73 = por %p71, %p72
    %p75 = scmp.ne.s32.totalorder %s60, %s74
    %p76 = scmp.eq.s32.totalorder %s15, 0
    %p77 = por %p75, %p76
    %s79 = sadd.s32 %s78, 1
    %p82 = scmp.eq.s32.totalorder %s9, 1
    %p83 = scmp.ne.s32.totalorder %s78, %s80
    %p84 = scmp.eq.s32.totalorder %s9, 0
    %p85 = por %p83, %p84
    %p86 = scmp.ne.s32.totalorder %s78, %s80
    %p87 = scmp.eq.s32.totalorder %s14, 1
    %p88 = por %p86, %p87
    %p89 = scmp.ne.s32.totalorder %s80, %s81
    %p90 = scmp.eq.s32.totalorder %s14, 0
    %p91 = por %p89, %p90
    %p92 = scmp.ne.s32.totalorder %s80, %s81
    %p93 = scmp.eq.s32.totalorder %s15, 1
    %p94 = por %p92, %p93
    %p96 = scmp.ne.s32.totalorder %s81, %s95
    %p97 = scmp.eq.s32.totalorder %s15, 0
    %p98 = por %p96, %p97
    %s99 = ssub.s32 %s16, %s28
    %s100 = ssub.s32 %s17, %s24
    %s101 = sor.u32 %s99, %s100
    %p102 = scmp.eq.s32.totalorder %s101, 0
    %s104 = sadd.s32 %s103, 1
    %s105 = scalar_select %p102, %s103, %s104
    %p108 = pneg %p102
    %p109 = scmp.eq.s32.totalorder %s9, 1
    %p110 = por %p108, %p109
    %p111 = scmp.ne.s32.totalorder %s103, %s106
    %p112 = scmp.eq.s32.totalorder %s9, 0
    %p113 = por %p111, %p112
    %p114 = scmp.ne.s32.totalorder %s103, %s106
    %p115 = scmp.eq.s32.totalorder %s14, 1
    %p116 = por %p114, %p115
    %p117 = scmp.ne.s32.totalorder %s106, %s107
    %p118 = scmp.eq.s32.totalorder %s14, 0
    %p119 = por %p117, %p118
    %p120 = scmp.ne.s32.totalorder %s106, %s107
    %p121 = scmp.eq.s32.totalorder %s15, 1
    %p122 = por %p120, %p121
    %p124 = scmp.ne.s32.totalorder %s107, %s123
    %p125 = scmp.eq.s32.totalorder %s15, 0
    %p126 = por %p124, %p125
    %p127 = scmp.le.s32.totalorder 1, %s9
    %p128 = scmp.lt.s32.totalorder %s9, 3
    %p129 = pnand %p127, %p128
    %p130 = pneg %p129
    // Predicated region
    $region9: #{drop_conv_block_forward.1} parent=5 // pred_check
      _
    $region10: #{drop_conv_block_forward.1} parent=5 // pred_check_branch
      %132 = sbr.rel (%p129) target = $region12
    $region11: #{drop_conv_block_forward.1} parent=5 // pred_region
      %s133 = ssub.s32 %s9, 1
      // Predicated region
      $region13: #{drop_conv_block_forward.1} parent=11 // pred_check
        %p134 = pneg %p70
      $region14: #{drop_conv_block_forward.1} parent=11 // pred_check_branch
        %136 = sbr.rel (%p134) target = $region16
      $region15: #{drop_conv_block_forward.1} parent=11 // pred_region
        _
      $region16: #{drop_conv_block_forward.1} parent=11 // pred_fallthru
        _
      // Predicated region
      $region17: #{drop_conv_block_forward.1} parent=11 // pred_check
        %p137 = pneg %p91
      $region18: #{drop_conv_block_forward.1} parent=11 // pred_check_branch
        %139 = sbr.rel (%p137) target = $region20
      $region19: #{drop_conv_block_forward.1} parent=11 // pred_region
        _
      $region20: #{drop_conv_block_forward.1} parent=11 // pred_fallthru
        _
    $region12: #{drop_conv_block_forward.1} parent=5 // pred_fallthru
      _
    %p140 = scmp.lt.s32.totalorder %s9, 2
    // Predicated region
    $region21: #{drop_conv_block_forward.1} parent=5 // pred_check
      %p141 = pneg %p140
    $region22: #{drop_conv_block_forward.1} parent=5 // pred_check_branch
      %143 = sbr.rel (%p141) target = $region24
    $region23: #{drop_conv_block_forward.1} parent=5 // pred_region
      // Predicated region
      $region25: #{drop_conv_block_forward.1} parent=23 // pred_check
        %p144 = pneg %p43
      $region26: #{drop_conv_block_forward.1} parent=23 // pred_check_branch
        %146 = sbr.rel (%p144) target = $region28
      $region27: #{drop_conv_block_forward.1} parent=23 // pred_region
        %p147 = scmp.lt.s32.totalorder %s16, 1
        %s148 = scalar_select %p147, %s16, 1
        %p149 = scmp.lt.s32.totalorder %s17, 0
        %s150 = scalar_select %p149, %s17, 0
        %s151 = smul.addr %s150, 8
        %s152 = smul.addr %s148, 8
        %s153 = sadd.s32 %s151, %s152
        %s154 = smul.addr %s153, 4
        %s155 = scalar_lea.vmem %s0, %s154
      $region28: #{drop_conv_block_forward.1} parent=23 // pred_fallthru
        _
    $region24: #{drop_conv_block_forward.1} parent=5 // pred_fallthru
      _
    %p156 = scmp.le.s32.totalorder 1, %s9
    %p157 = scmp.lt.s32.totalorder %s9, 3
    %p158 = pnand %p156, %p157
    %p159 = pneg %p158
    // Predicated region
    $region29: #{drop_conv_block_forward.1} parent=5 // pred_check
      _
    $region30: #{drop_conv_block_forward.1} parent=5 // pred_check_branch
      %161 = sbr.rel (%p158) target = $region32
    $region31: #{drop_conv_block_forward.1} parent=5 // pred_region
      %s162 = ssub.s32 %s9, 1
      %p163 = scmp.lt.s32.totalorder %s18, 1
      %s164 = scalar_select %p163, %s18, 1
      %p165 = scmp.lt.s32.totalorder %s19, 0
      %s166 = scalar_select %p165, %s19, 0
      %s167 = smul.addr %s166, 8
      %s168 = smul.addr %s164, 8
      %s169 = sadd.s32 %s167, %s168
      %s170 = smul.addr %s169, 4
      %s171 = scalar_lea.vmem %s0, %s170
      %p172 = pneg %p49
      %p173 = pneg %p46
      %p174 = pneg %p70
      %p175 = pneg %p67
      %p176 = pneg %p91
      %p177 = pneg %p88
      %p178 = pneg %p119
      %p179 = pneg %p116
      %s180 = smul.u32 3, %s19
      %p181 = scmp.lt.s32.totalorder %s18, 1
      %s182 = scalar_select %p181, %s18, 1
      %p183 = scmp.lt.s32.totalorder %s180, 2
      %s184 = scalar_select %p183, %s180, 2
      %s185 = smul.addr %s182, 6
      %s186 = sadd.s32 %s184, %s185
      %s187 = smul.addr %s186, 4
      %s188 = scalar_lea.vmem %s3, %s187
      %p189 = scmp.lt.s32.totalorder %s18, 1
      %s190 = scalar_select %p189, %s18, 1
      %p191 = scmp.lt.s32.totalorder %s19, 0
      %s192 = scalar_select %p191, %s19, 0
      %s193 = smul.addr %s192, 8
      %s194 = smul.addr %s190, 8
      %s195 = sadd.s32 %s193, %s194
      %s196 = smul.addr %s195, 4
      %s197 = scalar_lea.vmem %s0, %s196
      %s198 = smul.u32 3, %s19
      %p199 = scmp.lt.s32.totalorder %s18, 1
      %s200 = scalar_select %p199, %s18, 1
      %p201 = scmp.lt.s32.totalorder %s198, 2
      %s202 = scalar_select %p201, %s198, 2
      %s203 = smul.addr %s200, 6
      %s204 = sadd.s32 %s202, %s203
      %s205 = smul.addr %s204, 4
      %s206 = scalar_lea.vmem %s3, %s205
      %s207 = smul.u32 3, %s19
      %v209 = vld [vmem:[%s197] sm:$0xff]
      %v210 = vld [vmem:[%s197 + $0x8] sm:$0xf]
      %v211 = vld [vmem:[%s197 + $0x10] sm:$0xff]
      %v212 = vld [vmem:[%s197 + $0x18] sm:$0xf]
      %v217 = vunpack.c.l.b16 %v209
      %v218 = vunpack.c.h.b16 %v209
      %v219 = vunpack.c.l.b16 %v210
      %v220 = vunpack.c.l.b16 %v211
      %v221 = vunpack.c.h.b16 %v211
      %v222 = vunpack.c.l.b16 %v212
      %v223 = vpack.c.b16 %v220, %v217
      %v224 = vpack.c.b16 %v221, %v218
      %v225 = vpack.c.b16 %v222, %v219
      %229 = vst [vmem:[#allocation2] sm:$0xff] %v223
      %230 = vst [vmem:[#allocation2 + $0x8] sm:$0xff] %v224
      %231 = vst [vmem:[#allocation2 + $0x10] sm:$0xff] %v225
      %v232 = vld [vmem:[%s197] sm:$0xff]
      %v233 = vld [vmem:[%s197 + $0x8] sm:$0xff]
      %v234 = vld [vmem:[%s197 + $0x10] sm:$0xff]
      %v235 = vld [vmem:[%s197 + $0x18] sm:$0xff]
      %v240 = vunpack.c.l.b16 %v232
      %v241 = vunpack.c.h.b16 %v232
      %v242 = vunpack.c.l.b16 %v233
      %v243 = vunpack.c.h.b16 %v233
      %v244 = vunpack.c.l.b16 %v234
      %v245 = vunpack.c.h.b16 %v234
      %v246 = vunpack.c.l.b16 %v235
      %v247 = vunpack.c.h.b16 %v235
      %v248 = vpack.c.b16 %v244, %v240
      %v249 = vpack.c.b16 %v245, %v241
      %v250 = vpack.c.b16 %v246, %v242
      %v251 = vpack.c.b16 %v247, %v243
      %252 = vrot.lane.b32.xlu0 %v248, 127
      %v253 = vpop.permute.xlu0 %252
      %254 = vrot.lane.b32.xlu0 %v249, 127
      %v255 = vpop.permute.xlu0 %254
      %256 = vrot.lane.b32.xlu0 %v250, 127
      %v257 = vpop.permute.xlu0 %256
      %258 = vrot.lane.b32.xlu0 %v251, 127
      %v259 = vpop.permute.xlu0 %258
      %vm260 = vcmask 1039360
      %v261 = vsel %vm260, %v253, %v255
      %v262 = vsel %vm260, %v255, %v257
      %v263 = vsel %vm260, %v257, %v259
      %267 = vst [vmem:[#allocation2 + $0x18] sm:$0xff] %v261
      %268 = vst [vmem:[#allocation2 + $0x20] sm:$0xff] %v262
      %269 = vst [vmem:[#allocation2 + $0x28] sm:$0xff] %v263
      %v270 = vld [vmem:[%s197] sm:$0xff]
      %v271 = vld [vmem:[%s197 + $0x8] sm:$0xff]
      %v272 = vld [vmem:[%s197 + $0x10] sm:$0xff]
      %v273 = vld [vmem:[%s197 + $0x18] sm:$0xff]
      %v278 = vunpack.c.l.b16 %v270
      %v279 = vunpack.c.h.b16 %v270
      %v280 = vunpack.c.l.b16 %v271
      %v281 = vunpack.c.h.b16 %v271
      %v282 = vunpack.c.l.b16 %v272
      %v283 = vunpack.c.h.b16 %v272
      %v284 = vunpack.c.l.b16 %v273
      %v285 = vunpack.c.h.b16 %v273
      %v286 = vpack.c.b16 %v282, %v278
      %v287 = vpack.c.b16 %v283, %v279
      %v288 = vpack.c.b16 %v284, %v280
      %v289 = vpack.c.b16 %v285, %v281
      %290 = vrot.lane.b32.xlu0 %v286, 126
      %v291 = vpop.permute.xlu0 %290
      %292 = vrot.lane.b32.xlu0 %v287, 126
      %v293 = vpop.permute.xlu0 %292
      %294 = vrot.lane.b32.xlu0 %v288, 126
      %v295 = vpop.permute.xlu0 %294
      %296 = vrot.lane.b32.xlu0 %v289, 126
      %v297 = vpop.permute.xlu0 %296
      %vm298 = vcmask 1031168
      %v299 = vsel %vm298, %v291, %v293
      %v300 = vsel %vm298, %v293, %v295
      %v301 = vsel %vm298, %v295, %v297
      %305 = vst [vmem:[#allocation2 + $0x30] sm:$0xff] %v299
      %306 = vst [vmem:[#allocation2 + $0x38] sm:$0xff] %v300
      %307 = vst [vmem:[#allocation2 + $0x40] sm:$0xff] %v301
      %v308 = vld [vmem:[%s197] sm:$0xff]
      %v309 = vld [vmem:[%s197 + $0x8] sm:$0xff]
      %v310 = vld [vmem:[%s197 + $0x10] sm:$0xff]
      %v311 = vld [vmem:[%s197 + $0x18] sm:$0xff]
      %v316 = vunpack.c.l.b16 %v308
      %v317 = vunpack.c.h.b16 %v308
      %v318 = vunpack.c.l.b16 %v309
      %v319 = vunpack.c.h.b16 %v309
      %v320 = vunpack.c.l.b16 %v310
      %v321 = vunpack.c.h.b16 %v310
      %v322 = vunpack.c.l.b16 %v311
      %v323 = vunpack.c.h.b16 %v311
      %v324 = vpack.c.b16 %v320, %v316
      %v325 = vpack.c.b16 %v321, %v317
      %v326 = vpack.c.b16 %v322, %v318
      %v327 = vpack.c.b16 %v323, %v319
      %328 = vrot.lane.b32.xlu0 %v324, 110
      %v329 = vpop.permute.xlu0 %328
      %330 = vrot.lane.b32.xlu0 %v325, 110
      %v331 = vpop.permute.xlu0 %330
      %332 = vrot.lane.b32.xlu0 %v326, 110
      %v333 = vpop.permute.xlu0 %332
      %334 = vrot.lane.b32.xlu0 %v327, 110
      %v335 = vpop.permute.xlu0 %334
      %vm336 = vcmask 900096
      %v337 = vsel %vm336, %v329, %v331
      %v338 = vsel %vm336, %v331, %v333
      %v339 = vsel %vm336, %v333, %v335
      %343 = vst [vmem:[#allocation2 + $0x48] sm:$0xff] %v337
      %344 = vst [vmem:[#allocation2 + $0x50] sm:$0xff] %v338
      %345 = vst [vmem:[#allocation2 + $0x58] sm:$0xff] %v339
      %v346 = vld [vmem:[%s197] sm:$0xff]
      %v347 = vld [vmem:[%s197 + $0x8] sm:$0xff]
      %v348 = vld [vmem:[%s197 + $0x10] sm:$0xff]
      %v349 = vld [vmem:[%s197 + $0x18] sm:$0xff]
      %v354 = vunpack.c.l.b16 %v346
      %v355 = vunpack.c.h.b16 %v346
      %v356 = vunpack.c.l.b16 %v347
      %v357 = vunpack.c.h.b16 %v347
      %v358 = vunpack.c.l.b16 %v348
      %v359 = vunpack.c.h.b16 %v348
      %v360 = vunpack.c.l.b16 %v349
      %v361 = vunpack.c.h.b16 %v349
      %v362 = vpack.c.b16 %v358, %v354
      %v363 = vpack.c.b16 %v359, %v355
      %v364 = vpack.c.b16 %v360, %v356
      %v365 = vpack.c.b16 %v361, %v357
      %366 = vrot.lane.b32.xlu0 %v362, 109
      %v367 = vpop.permute.xlu0 %366
      %368 = vrot.lane.b32.xlu0 %v363, 109
      %v369 = vpop.permute.xlu0 %368
      %370 = vrot.lane.b32.xlu0 %v364, 109
      %v371 = vpop.permute.xlu0 %370
      %372 = vrot.lane.b32.xlu0 %v365, 109
      %v373 = vpop.permute.xlu0 %372
      %vm374 = vcmask 891904
      %v375 = vsel %vm374, %v367, %v369
      %v376 = vsel %vm374, %v369, %v371
      %v377 = vsel %vm374, %v371, %v373
      %381 = vst [vmem:[#allocation2 + $0x60] sm:$0xff] %v375
      %382 = vst [vmem:[#allocation2 + $0x68] sm:$0xff] %v376
      %383 = vst [vmem:[#allocation2 + $0x70] sm:$0xff] %v377
      %v384 = vld [vmem:[%s197] sm:$0xff]
      %v385 = vld [vmem:[%s197 + $0x8] sm:$0xff]
      %v386 = vld [vmem:[%s197 + $0x10] sm:$0xff]
      %v387 = vld [vmem:[%s197 + $0x18] sm:$0xff]
      %v392 = vunpack.c.l.b16 %v384
      %v393 = vunpack.c.h.b16 %v384
      %v394 = vunpack.c.l.b16 %v385
      %v395 = vunpack.c.h.b16 %v385
      %v396 = vunpack.c.l.b16 %v386
      %v397 = vunpack.c.h.b16 %v386
      %v398 = vunpack.c.l.b16 %v387
      %v399 = vunpack.c.h.b16 %v387
      %v400 = vpack.c.b16 %v396, %v392
      %v401 = vpack.c.b16 %v397, %v393
      %v402 = vpack.c.b16 %v398, %v394
      %v403 = vpack.c.b16 %v399, %v395
      %404 = vrot.lane.b32.xlu0 %v400, 108
      %v405 = vpop.permute.xlu0 %404
      %406 = vrot.lane.b32.xlu0 %v401, 108
      %v407 = vpop.permute.xlu0 %406
      %408 = vrot.lane.b32.xlu0 %v402, 108
      %v409 = vpop.permute.xlu0 %408
      %410 = vrot.lane.b32.xlu0 %v403, 108
      %v411 = vpop.permute.xlu0 %410
      %vm412 = vcmask 883712
      %v413 = vsel %vm412, %v405, %v407
      %v414 = vsel %vm412, %v407, %v409
      %v415 = vsel %vm412, %v409, %v411
      %419 = vst [vmem:[#allocation2 + $0x78] sm:$0xff] %v413
      %420 = vst [vmem:[#allocation2 + $0x80] sm:$0xff] %v414
      %421 = vst [vmem:[#allocation2 + $0x88] sm:$0xff] %v415
      %v422 = vld [vmem:[%s197] sm:$0xff]
      %v423 = vld [vmem:[%s197 + $0x8] sm:$0xff]
      %v424 = vld [vmem:[%s197 + $0x10] sm:$0xff]
      %v425 = vld [vmem:[%s197 + $0x18] sm:$0xff]
      %v430 = vunpack.c.l.b16 %v422
      %v431 = vunpack.c.h.b16 %v422
      %v432 = vunpack.c.l.b16 %v423
      %v433 = vunpack.c.h.b16 %v423
      %v434 = vunpack.c.l.b16 %v424
      %v435 = vunpack.c.h.b16 %v424
      %v436 = vunpack.c.l.b16 %v425
      %v437 = vunpack.c.h.b16 %v425
      %v438 = vpack.c.b16 %v434, %v430
      %v439 = vpack.c.b16 %v435, %v431
      %v440 = vpack.c.b16 %v436, %v432
      %v441 = vpack.c.b16 %v437, %v433
      %442 = vrot.lane.b32.xlu0 %v438, 92
      %v443 = vpop.permute.xlu0 %442
      %444 = vrot.lane.b32.xlu0 %v439, 92
      %v445 = vpop.permute.xlu0 %444
      %446 = vrot.lane.b32.xlu0 %v440, 92
      %v447 = vpop.permute.xlu0 %446
      %448 = vrot.lane.b32.xlu0 %v441, 92
      %v449 = vpop.permute.xlu0 %448
      %vm450 = vcmask 752640
      %v451 = vsel %vm450, %v443, %v445
      %v452 = vsel %vm450, %v445, %v447
      %v453 = vsel %vm450, %v447, %v449
      %457 = vst [vmem:[#allocation2 + $0x90] sm:$0xff] %v451
      %458 = vst [vmem:[#allocation2 + $0x98] sm:$0xff] %v452
      %459 = vst [vmem:[#allocation2 + $0xa0] sm:$0xff] %v453
      %v460 = vld [vmem:[%s197] sm:$0xff]
      %v461 = vld [vmem:[%s197 + $0x8] sm:$0xff]
      %v462 = vld [vmem:[%s197 + $0x10] sm:$0xff]
      %v463 = vld [vmem:[%s197 + $0x18] sm:$0xff]
      %v468 = vunpack.c.l.b16 %v460
      %v469 = vunpack.c.h.b16 %v460
      %v470 = vunpack.c.l.b16 %v461
      %v471 = vunpack.c.h.b16 %v461
      %v472 = vunpack.c.l.b16 %v462
      %v473 = vunpack.c.h.b16 %v462
      %v474 = vunpack.c.l.b16 %v463
      %v475 = vunpack.c.h.b16 %v463
      %v476 = vpack.c.b16 %v472, %v468
      %v477 = vpack.c.b16 %v473, %v469
      %v478 = vpack.c.b16 %v474, %v470
      %v479 = vpack.c.b16 %v475, %v471
      %480 = vrot.lane.b32.xlu0 %v476, 91
      %v481 = vpop.permute.xlu0 %480
      %482 = vrot.lane.b32.xlu0 %v477, 91
      %v483 = vpop.permute.xlu0 %482
      %484 = vrot.lane.b32.xlu0 %v478, 91
      %v485 = vpop.permute.xlu0 %484
      %486 = vrot.lane.b32.xlu0 %v479, 91
      %v487 = vpop.permute.xlu0 %486
      %vm488 = vcmask 744448
      %v489 = vsel %vm488, %v481, %v483
      %v490 = vsel %vm488, %v483, %v485
      %v491 = vsel %vm488, %v485, %v487
      %495 = vst [vmem:[#allocation2 + $0xa8] sm:$0xff] %v489
      %496 = vst [vmem:[#allocation2 + $0xb0] sm:$0xff] %v490
      %497 = vst [vmem:[#allocation2 + $0xb8] sm:$0xff] %v491
      %v498 = vld [vmem:[%s197] sm:$0xff]
      %v499 = vld [vmem:[%s197 + $0x8] sm:$0xff]
      %v500 = vld [vmem:[%s197 + $0x10] sm:$0xff]
      %v501 = vld [vmem:[%s197 + $0x18] sm:$0xff]
      %v506 = vunpack.c.l.b16 %v498
      %v507 = vunpack.c.h.b16 %v498
      %v508 = vunpack.c.l.b16 %v499
      %v509 = vunpack.c.h.b16 %v499
      %v510 = vunpack.c.l.b16 %v500
      %v511 = vunpack.c.h.b16 %v500
      %v512 = vunpack.c.l.b16 %v501
      %v513 = vunpack.c.h.b16 %v501
      %v514 = vpack.c.b16 %v510, %v506
      %v515 = vpack.c.b16 %v511, %v507
      %v516 = vpack.c.b16 %v512, %v508
      %v517 = vpack.c.b16 %v513, %v509
      %518 = vrot.lane.b32.xlu0 %v514, 90
      %v519 = vpop.permute.xlu0 %518
      %520 = vrot.lane.b32.xlu0 %v515, 90
      %v521 = vpop.permute.xlu0 %520
      %522 = vrot.lane.b32.xlu0 %v516, 90
      %v523 = vpop.permute.xlu0 %522
      %524 = vrot.lane.b32.xlu0 %v517, 90
      %v525 = vpop.permute.xlu0 %524
      %vm526 = vcmask 736256
      %v527 = vsel %vm526, %v519, %v521
      %v528 = vsel %vm526, %v521, %v523
      %v529 = vsel %vm526, %v523, %v525
      %533 = vst [vmem:[#allocation2 + $0xc0] sm:$0xff] %v527
      %534 = vst [vmem:[#allocation2 + $0xc8] sm:$0xff] %v528
      %535 = vst [vmem:[#allocation2 + $0xd0] sm:$0xff] %v529
      %v536 = vld [vmem:[%s1] sm:$0xff]
      %v537 = vld [vmem:[%s1 + $0x8] sm:$0xff]
      %v538 = vld [vmem:[#allocation2] sm:$0xff]
      %v539 = vld [vmem:[#allocation2 + $0x8] sm:$0xff]
      %v540 = vld [vmem:[#allocation2 + $0x10] sm:$0xff]
      %v541 = vld [vmem:[#allocation2 + $0x18] sm:$0xff]
      %v542 = vld [vmem:[#allocation2 + $0x20] sm:$0xff]
      %v543 = vld [vmem:[#allocation2 + $0x28] sm:$0xff]
      %v544 = vld [vmem:[#allocation2 + $0x30] sm:$0xff]
      %v545 = vld [vmem:[#allocation2 + $0x38] sm:$0xff]
      %v546 = vld [vmem:[#allocation2 + $0x40] sm:$0xff]
      %v547 = vld [vmem:[#allocation2 + $0x48] sm:$0xff]
      %v548 = vld [vmem:[#allocation2 + $0x50] sm:$0xff]
      %v549 = vld [vmem:[#allocation2 + $0x58] sm:$0xff]
      %v550 = vld [vmem:[#allocation2 + $0x60] sm:$0xff]
      %v551 = vld [vmem:[#allocation2 + $0x68] sm:$0xff]
      %v552 = vld [vmem:[#allocation2 + $0x70] sm:$0xff]
      %v553 = vld [vmem:[#allocation2 + $0x78] sm:$0xff]
      %v554 = vld [vmem:[#allocation2 + $0x80] sm:$0xff]
      %v555 = vld [vmem:[#allocation2 + $0x88] sm:$0xff]
      %v556 = vld [vmem:[#allocation2 + $0x90] sm:$0xff]
      %v557 = vld [vmem:[#allocation2 + $0x98] sm:$0xff]
      %v558 = vld [vmem:[#allocation2 + $0xa0] sm:$0xff]
      %v559 = vld [vmem:[#allocation2 + $0xa8] sm:$0xff]
      %v560 = vld [vmem:[#allocation2 + $0xb0] sm:$0xff]
      %v561 = vld [vmem:[#allocation2 + $0xb8] sm:$0xff]
      %v562 = vld [vmem:[#allocation2 + $0xc0] sm:$0xff]
      %v563 = vld [vmem:[#allocation2 + $0xc8] sm:$0xff]
      %v564 = vld [vmem:[#allocation2 + $0xd0] sm:$0xff]
      %v565 = vld [vmem:[%s2] sm:$0xff]
      %v566 = vld [vmem:[%s2 + $0x8] sm:$0xff]
      %568 = vset.pattern.permute.xlu0 0
      %569 = vperm.xlu0 %568, %v565
      %v570 = vpop.permute.xlu0 %569
      %573 = vset.pattern.permute.xlu0 0
      %574 = vperm.xlu0 %573, %v566
      %v575 = vpop.permute.xlu0 %574
      %v579 = vunpack.c.l.b16 %v536
      %v580 = vunpack.c.h.b16 %v536
      %v581 = vunpack.c.l.b16 %v537
      %v582 = vunpack.c.h.b16 %v537
      %v583 = vpack.c.b16 %v581, %v579
      %v584 = vpack.c.b16 %v582, %v580
      %vm586 = vcmask 130048
      %v588 = vsel %vm586, %v584, 0
      %590 = vmatprep.subr.bf16.mxu0 %v539
      %591 = vmatpush1.bf16.msra.mxu0 %v538
      %592 = vmatprep.subr.bf16.mxu0 %v542
      %593 = vmatpush1.bf16.msra.mxu0 %v541
      %594 = vmatprep.subr.bf16.mxu0 %v545
      %595 = vmatpush1.bf16.msra.mxu0 %v544
      %596 = vmatprep.subr.bf16.mxu0 %v548
      %597 = vmatpush1.bf16.msra.mxu0 %v547
      %598 = vmatprep.subr.bf16.mxu0 %v551
      %599 = vmatpush1.bf16.msra.mxu0 %v550
      %600 = vmatprep.subr.bf16.mxu0 %v554
      %601 = vmatpush1.bf16.msra.mxu0 %v553
      %602 = vmatprep.subr.bf16.mxu0 %v557
      %603 = vmatpush1.bf16.msra.mxu0 %v556
      %604 = vmatprep.subr.bf16.mxu0 %v560
      %605 = vmatpush1.bf16.msra.mxu0 %v559
      %606 = vmatprep.subr.bf16.mxu0 %v563
      %607 = vmatpush1.bf16.msra.mxu0 %v562
      %608 = vmatprep.subr.bf16.mxu0 0
      %609 = vmatpush1.bf16.msra.mxu0 0
      %610 = vmatprep.subr.bf16.mxu0 0
      %611 = vmatpush1.bf16.msra.mxu0 0
      %612 = vmatprep.subr.bf16.mxu0 0
      %613 = vmatpush1.bf16.msra.mxu0 0
      %614 = vmatprep.subr.bf16.mxu0 0
      %615 = vmatpush1.bf16.msra.mxu0 0
      %616 = vmatprep.subr.bf16.mxu0 0
      %617 = vmatpush1.bf16.msra.mxu0 0
      %618 = vmatprep.subr.bf16.mxu0 0
      %619 = vmatpush1.bf16.msra.mxu0 0
      %620 = vmatprep.subr.bf16.mxu0 0
      %621 = vmatpush1.bf16.msra.mxu0 0
      %622 = vmatprep.mubr.bf16.mxu0 %v588
      %623 = vmatmul.mubr.bf16.gmra.mrb[0].mxu0 %v583
      %v624 = vpop.f32.mrb[0].mxu0
      %v625 = vadd.f32 %v570, %v624
      %v626 = vpop.f32.mrb[0].mxu0
      %v627 = vadd.f32 %v570, %v626
      %v628 = vpop.f32.mrb[0].mxu0
      %v629 = vadd.f32 %v575, %v628
      %v630 = vpop.f32.mrb[0].mxu0
      %v631 = vadd.f32 %v575, %v630
      %632 = vdwg.mxu0
      %633 = vmatprep.subr.bf16.mxu0 0
      %634 = vmatpush1.bf16.msra.mxu0 %v540
      %635 = vmatprep.subr.bf16.mxu0 0
      %636 = vmatpush1.bf16.msra.mxu0 %v543
      %637 = vmatprep.subr.bf16.mxu0 0
      %638 = vmatpush1.bf16.msra.mxu0 %v546
      %639 = vmatprep.subr.bf16.mxu0 0
      %640 = vmatpush1.bf16.msra.mxu0 %v549
      %641 = vmatprep.subr.bf16.mxu0 0
      %642 = vmatpush1.bf16.msra.mxu0 %v552
      %643 = vmatprep.subr.bf16.mxu0 0
      %644 = vmatpush1.bf16.msra.mxu0 %v555
      %645 = vmatprep.subr.bf16.mxu0 0
      %646 = vmatpush1.bf16.msra.mxu0 %v558
      %647 = vmatprep.subr.bf16.mxu0 0
      %648 = vmatpush1.bf16.msra.mxu0 %v561
      %649 = vmatprep.subr.bf16.mxu0 0
      %650 = vmatpush1.bf16.msra.mxu0 %v564
      %651 = vmatprep.subr.bf16.mxu0 0
      %652 = vmatpush1.bf16.msra.mxu0 0
      %653 = vmatprep.subr.bf16.mxu0 0
      %654 = vmatpush1.bf16.msra.mxu0 0
      %655 = vmatprep.subr.bf16.mxu0 0
      %656 = vmatpush1.bf16.msra.mxu0 0
      %657 = vmatprep.subr.bf16.mxu0 0
      %658 = vmatpush1.bf16.msra.mxu0 0
      %659 = vmatprep.subr.bf16.mxu0 0
      %660 = vmatpush1.bf16.msra.mxu0 0
      %661 = vmatprep.subr.bf16.mxu0 0
      %662 = vmatpush1.bf16.msra.mxu0 0
      %663 = vmatprep.subr.bf16.mxu0 0
      %664 = vmatpush1.bf16.msra.mxu0 0
      %665 = vmatprep.mubr.bf16.mxu0 %v588
      %666 = vmatmul.mubr.bf16.gmra.mrb[0].mxu0 %v583
      %v667 = vpop.f32.mrb[0].mxu0
      %v668 = vadd.f32 %v570, %v667
      %v669 = vpop.f32.mrb[0].mxu0
      %v670 = vpop.f32.mrb[0].mxu0
      %v671 = vadd.f32 %v575, %v670
      %v672 = vpop.f32.mrb[0].mxu0
      %673 = vdwg.mxu0
      %v674 = vmax.f32 %v625, 0.0
      %v675 = vmax.f32 %v627, 0.0
      %v676 = vmax.f32 %v668, 0.0
      %v677 = vmax.f32 %v629, 0.0
      %v678 = vmax.f32 %v631, 0.0
      %v679 = vmax.f32 %v671, 0.0
      %v680 = vpack.c.bf16 %v677, %v674
      %v681 = vpack.c.bf16 %v678, %v675
      %v682 = vpack.c.bf16 %v679, %v676
      %v686 = vunpack.c.l.b16 %v680
      %v687 = vunpack.c.l.b16 %v681
      %v688 = vunpack.c.l.b16 %v682
      %v689 = vunpack.c.h.b16 %v680
      %v690 = vunpack.c.h.b16 %v681
      %v691 = vunpack.c.h.b16 %v682
      %v692 = vpack.c.b16 %v687, %v686
      %v693 = vpack.c.b16 %v688, %v688
      %v694 = vpack.c.b16 %v690, %v689
      %v695 = vpack.c.b16 %v691, %v691
      %700 = vst [vmem:[%s206] sm:$0xff] %v692
      %701 = vst [vmem:[%s206 + $0x8] sm:$0xf] %v693
      %702 = vst [vmem:[%s206 + $0xc] sm:$0xff] %v694
      %703 = vst [vmem:[%s206 + $0x14] sm:$0xf] %v695
      %s704 = smul.u32 3, %s19
      %p705 = scmp.lt.s32.totalorder %s18, 1
      %s706 = scalar_select %p705, %s18, 1
      %p707 = scmp.lt.s32.totalorder %s704, 2
      %s708 = scalar_select %p707, %s704, 2
      %s709 = smul.addr %s706, 6
      %s710 = sadd.s32 %s708, %s709
      %s711 = smul.addr %s710, 4
      %s712 = scalar_lea.vmem %s3, %s711
      // Predicated region
      $region33: #{drop_conv_block_forward.1} parent=31 // pred_check
        %p713 = pneg %p116
      $region34: #{drop_conv_block_forward.1} parent=31 // pred_check_branch
        %715 = sbr.rel (%p713) target = $region36
      $region35: #{drop_conv_block_forward.1} parent=31 // pred_region
        %s716 = smul.u32 3, %s19
      $region36: #{drop_conv_block_forward.1} parent=31 // pred_fallthru
        _
    $region32: #{drop_conv_block_forward.1} parent=5 // pred_fallthru
      _
    %p717 = scmp.le.s32.totalorder 2, %s9
    // Predicated region
    $region37: #{drop_conv_block_forward.1} parent=5 // pred_check
      %p718 = pneg %p717
    $region38: #{drop_conv_block_forward.1} parent=5 // pred_check_branch
      %720 = sbr.rel (%p718) target = $region40
    $region39: #{drop_conv_block_forward.1} parent=5 // pred_region
      %s721 = ssub.s32 %s9, 2
      // Predicated region
      $region41: #{drop_conv_block_forward.1} parent=39 // pred_check
        %p722 = pneg %p122
      $region42: #{drop_conv_block_forward.1} parent=39 // pred_check_branch
        %724 = sbr.rel (%p722) target = $region44
      $region43: #{drop_conv_block_forward.1} parent=39 // pred_region
        %s725 = smul.u32 3, %s21
        %p726 = scmp.lt.s32.totalorder %s20, 1
        %s727 = scalar_select %p726, %s20, 1
        %p728 = scmp.lt.s32.totalorder %s725, 2
        %s729 = scalar_select %p728, %s725, 2
        %s730 = smul.addr %s727, 6
        %s731 = sadd.s32 %s729, %s730
        %s732 = smul.addr %s731, 4
        %s733 = scalar_lea.vmem %s3, %s732
      $region44: #{drop_conv_block_forward.1} parent=39 // pred_fallthru
        _
    $region40: #{drop_conv_block_forward.1} parent=5 // pred_fallthru
      _
  $region6: #{drop_conv_block_forward.1} parent=0 // loop_footer
    %s13 = sadd.s32 1, %s9
  $region7: #{drop_conv_block_forward.1} parent=0 // loop_footer_branch
    %8 = sbr.rel target = $region3
  $region8: #{drop_conv_block_forward.1} parent=0 // loop_exit
    _

</llo_original>
